<compile_context>
chip_gen: v5e
topology: v5e:2x2
jax: 0.10.0
libtpu: 0.0.40
codegen_flags: <defaults>
</compile_context>

<pallas_src>
import jax
import jax.numpy as jnp
from jax.experimental import pallas as pl
from jax.experimental.pallas import tpu as pltpu


def _round_up(n, m):
    return ((n + m - 1) // m) * m


def _vmem_cap_bytes():
    """~75% of this generation's physical VMEM (v5e/v6e: 128 MiB, v7x: 64 MiB)."""
    try:
        phys = pltpu.get_tpu_info().vmem_capacity_bytes
    except Exception:  # pragma: no cover - conservative fallback, safe on every gen
        phys = 64 << 20
    return (phys * 3) // 4


def _fmodel_kernel(x_ref, w1_ref, b1_ref, w2_ref, b2_ref, logits_ref, feat_ref):
    """One batch tile of the 2-layer MLP: bf16 MXU inputs, f32 accumulation."""
    x = x_ref[...].astype(jnp.bfloat16)                        # in-kernel cast (no XLA pre-pass)
    h = jnp.dot(x, w1_ref[...],
                preferred_element_type=jnp.float32) + b1_ref[...]
    h = jnp.maximum(h, 0.0)                                    # relu (VPU, f32)
    feat_ref[...] = h.astype(jnp.bfloat16)                     # features[repr_layer], bf16 writeback
    logits = jnp.dot(h.astype(jnp.bfloat16), w2_ref[...],
                     preferred_element_type=jnp.float32) + b2_ref[...]
    logits_ref[...] = logits                                   # narrow (tb, n_classes) f32 store


class OutputHead:
    """JAX mirror of the torch OutputHead (forward-pass fields)."""

    def __init__(self, logits, features):
        self.logits = logits
        self.features = features
        self.predprobs = jax.nn.softmax(logits, axis=-1)       # exact softmax, tiny array
        self.predictions = jnp.argmax(logits, axis=1)

    def get_label(self, y):
        logp = jax.nn.log_softmax(self.logits, axis=-1)
        self.losses = -jnp.take_along_axis(logp, y[:, None], axis=-1)[:, 0]
        self.loss = self.losses.mean()
        self.accs = (self.predictions == y).astype(jnp.float32)
        self.acc = self.accs.mean()


class FModelWrapperPallas:
    """Pallas implementation of FModelWrapper.forward with a 2-layer MLP model."""

    def __init__(self, d_in, d_hidden, n_classes, repr_layer=0, seed=0):
        assert d_hidden % 128 == 0, "d_hidden must be a multiple of 128 lanes"
        self._repr_layer = repr_layer
        self.d_in = d_in
        self.d_hidden = d_hidden
        self.n_classes = n_classes

        k1, k2 = jax.random.split(jax.random.PRNGKey(seed))
        # deterministic f32 master parameters
        self.w1 = jax.random.normal(k1, (d_in, d_hidden), jnp.float32) * (d_in ** -0.5)
        self.b1 = jnp.zeros((1, d_hidden), jnp.float32)
        self.w2 = jax.random.normal(k2, (d_hidden, n_classes), jnp.float32) * (d_hidden ** -0.5)
        self.b2 = jnp.zeros((1, n_classes), jnp.float32)

        # pre-cast bf16 MXU operands (weights are read once per call, kept resident)
        self._w1_bf = self.w1.astype(jnp.bfloat16)
        self._w2_bf = self.w2.astype(jnp.bfloat16)

    def _vmem_bytes(self, tb):
        """Per-call VMEM estimate (resident weights single-buffered, I/O double-buffered)."""
        x_io = 2 * tb * self.d_in * 4                                           # f32 x tile
        w = (self.d_in * self.d_hidden + self.d_hidden * self.n_classes) * 2    # bf16, Buffered(1)
        bias = (self.d_hidden + self.n_classes) * 4
        outs = 2 * tb * (self.n_classes * 4 + self.d_hidden * 2)                # logits f32 + feat bf16
        return x_io + w + bias + outs

    def __call__(self, x_nchw):
        b = x_nchw.shape[0]
        x = x_nchw.reshape(b, -1)                   # NCHW -> (B, C*H*W); contiguous, free
        assert x.shape[1] == self.d_in
        if x.dtype not in (jnp.float32, jnp.bfloat16):
            x = x.astype(jnp.float32)

        vmem_cap = _vmem_cap_bytes()
        w_bytes = ((self.d_in * self.d_hidden + self.d_hidden * self.n_classes) * 2
                   + (self.d_hidden + self.n_classes) * 4)
        if w_bytes > (vmem_cap * 3) // 5:
            # TODO(synk): add a K (d_in) reduction grid axis with an f32 VMEM accumulator
            # + pl.when init/finalize so very large weights still fit v7x's 64 MiB VMEM.
            raise NotImplementedError(
                f"resident weights ({w_bytes} B) exceed the VMEM budget ({vmem_cap} B)")

        # Batch tile: multiple of 16 (bf16 sublane packing), large to amortize per-step
        # overhead, but keep >=2 grid steps when the batch allows so v7x's two
        # TensorCores both participate.  Shrink only if the VMEM estimate overflows.
        b16 = _round_up(b, 16)
        tb = min(1024, b16)
        if b16 >= 32 and b16 // tb < 2:
            tb = _round_up(b16 // 2, 16)
        while tb > 16 and self._vmem_bytes(tb) > vmem_cap:
            tb = max(16, _round_up(tb // 2, 16))
        b_pad = _round_up(b, tb)
        if b_pad != b:
            x = jnp.pad(x, ((0, b_pad - b), (0, 0)))       # batch-only pad, dtype preserved

        vmem_limit = int(min(vmem_cap, max(8 << 20, 1.5 * self._vmem_bytes(tb))))

        out_shapes = (
            jax.ShapeDtypeStruct((b_pad, self.n_classes), jnp.float32),   # logits (narrow)
            jax.ShapeDtypeStruct((b_pad, self.d_hidden), jnp.bfloat16),   # features[repr_layer]
        )
        resident = pl.Buffered(1)   # constant index_map -> one buffer, halves weight VMEM

        logits_pad, feat = pl.pallas_call(
            _fmodel_kernel,
            out_shape=out_shapes,
            grid_spec=pltpu.PrefetchScalarGridSpec(
                num_scalar_prefetch=0,
                grid=(b_pad // tb,),
                in_specs=[
                    pl.BlockSpec((tb, self.d_in), lambda i: (i, 0)),              # x tile
                    pl.BlockSpec((self.d_in, self.d_hidden), lambda i: (0, 0),
                                 pipeline_mode=resident),                         # W1 resident
                    pl.BlockSpec((1, self.d_hidden), lambda i: (0, 0),
                                 pipeline_mode=resident),                         # b1 resident
                    pl.BlockSpec((self.d_hidden, self.n_classes), lambda i: (0, 0),
                                 pipeline_mode=resident),                         # W2 resident
                    pl.BlockSpec((1, self.n_classes), lambda i: (0, 0),
                                 pipeline_mode=resident),                         # b2 resident
                ],
                out_specs=[
                    pl.BlockSpec((tb, self.n_classes), lambda i: (i, 0)),
                    pl.BlockSpec((tb, self.d_hidden), lambda i: (i, 0)),
                ],
            ),
            compiler_params=pltpu.CompilerParams(
                dimension_semantics=("parallel",),      # v7x: batch sharded across 2 TCs
                vmem_limit_bytes=vmem_limit,
            ),
        )(x, self._w1_bf, self.b1, self._w2_bf, self.b2)

        # strip batch padding outside the kernel; softmax/argmax run on the tiny slice
        logits = logits_pad[:b]
        features = [feat[:b]]
        return OutputHead(logits, features[self._repr_layer])


if __name__ == "__main__":
    # small shapes: batch=2, channels=4, spatial=16x16, hidden=128, classes=10
    B, C, H, W = 2, 4, 16, 16
    D_IN = C * H * W
    D_HIDDEN = 128
    N_CLASSES = 10

    key = jax.random.PRNGKey(0)
    x = jax.random.normal(key, (B, C, H, W), jnp.float32)   # NCHW like PyTorch

    model = FModelWrapperPallas(D_IN, D_HIDDEN, N_CLASSES, repr_layer=0, seed=0)
    head = model(x)

    jax.block_until_ready(head.logits)
    jax.block_until_ready(head.features)
    jax.block_until_ready(head.predprobs)
    jax.block_until_ready(head.predictions)

    # reference with the same bf16 matmul inputs / f32 accumulation as the kernel
    xf = x.reshape(B, -1)
    h_ref = jnp.maximum(
        jnp.dot(xf.astype(jnp.bfloat16), model.w1.astype(jnp.bfloat16),
                preferred_element_type=jnp.float32) + model.b1, 0.0)
    logits_ref = jnp.dot(h_ref.astype(jnp.bfloat16), model.w2.astype(jnp.bfloat16),
                         preferred_element_type=jnp.float32) + model.b2

    assert jnp.allclose(head.logits, logits_ref, atol=1e-2, rtol=1e-2)
    # features are written back as bf16 -> compare with bf16-level tolerance
    assert jnp.allclose(head.features.astype(jnp.float32), h_ref, atol=3e-2, rtol=3e-2)
    assert jnp.allclose(head.predprobs, jax.nn.softmax(logits_ref, -1), atol=1e-3)
    assert jnp.array_equal(head.predictions, jnp.argmax(logits_ref, axis=1))
    assert float(jnp.abs(jnp.sum(head.predprobs, axis=-1) - 1.0).max()) < 1e-5

    print("KERNEL_OK")
</pallas_src>

<mosaic_0001>
module attributes {stable_mosaic.version = 11 : i64} {
  func.func @_fmodel_kernel(%arg0: i32, %arg1: memref<16x1024xf32, #tpu.memory_space<vmem>>, %arg2: memref<1024x128xbf16, #tpu.memory_space<vmem>>, %arg3: memref<1x128xf32, #tpu.memory_space<vmem>>, %arg4: memref<128x10xbf16, #tpu.memory_space<vmem>>, %arg5: memref<1x10xf32, #tpu.memory_space<vmem>>, %arg6: memref<16x10xf32, #tpu.memory_space<vmem>>, %arg7: memref<16x128xbf16, #tpu.memory_space<vmem>>) attributes {dimension_semantics = [#tpu.dimension_semantics<parallel>], iteration_bounds = array<i64: 1>, scalar_prefetch = 0 : i64, scratch_operands = 0 : i64, tpu.core_type = #tpu.core_type<tc>, window_params = [{transform_indices = @transform_0, window_bounds = array<i64: 16, 1024>}, {pipeline_mode = #tpu.pipeline_mode<synchronous>, transform_indices = @transform_1, window_bounds = array<i64: 1024, 128>}, {pipeline_mode = #tpu.pipeline_mode<synchronous>, transform_indices = @transform_2, window_bounds = array<i64: 1, 128>}, {pipeline_mode = #tpu.pipeline_mode<synchronous>, transform_indices = @transform_3, window_bounds = array<i64: 128, 10>}, {pipeline_mode = #tpu.pipeline_mode<synchronous>, transform_indices = @transform_4, window_bounds = array<i64: 1, 10>}, {transform_indices = @transform_5, window_bounds = array<i64: 16, 10>}, {transform_indices = @transform_6, window_bounds = array<i64: 16, 128>}]} {
    %c0 = arith.constant 0 : index
    %c0_0 = arith.constant 0 : index
    %0 = vector.load %arg1[%c0, %c0_0] : memref<16x1024xf32, #tpu.memory_space<vmem>>, vector<16x1024xf32>
    %1 = arith.truncf %0 : vector<16x1024xf32> to vector<16x1024xbf16>
    %c0_1 = arith.constant 0 : index
    %c0_2 = arith.constant 0 : index
    %2 = vector.load %arg2[%c0_1, %c0_2] : memref<1024x128xbf16, #tpu.memory_space<vmem>>, vector<1024x128xbf16>
    %cst = arith.constant dense<0.000000e+00> : vector<16x128xf32>
    %3 = tpu.matmul %1, %2, %cst {dimension_numbers = #tpu.dot_dimension_numbers<[1], [0], [0], [1], [0, 0, 1, 1], [], []>} : vector<16x1024xbf16>, vector<1024x128xbf16>, vector<16x128xf32> -> vector<16x128xf32>
    %c0_3 = arith.constant 0 : index
    %c0_4 = arith.constant 0 : index
    %4 = vector.load %arg3[%c0_3, %c0_4] : memref<1x128xf32, #tpu.memory_space<vmem>>, vector<1x128xf32>
    %5 = vector.broadcast %4 : vector<1x128xf32> to vector<16x128xf32>
    %6 = arith.addf %3, %5 : vector<16x128xf32>
    %cst_5 = arith.constant 0.000000e+00 : f32
    %7 = vector.broadcast %cst_5 : f32 to vector<16x128xf32>
    %8 = arith.maximumf %6, %7 : vector<16x128xf32>
    %9 = arith.truncf %8 : vector<16x128xf32> to vector<16x128xbf16>
    %c0_6 = arith.constant 0 : index
    %c0_7 = arith.constant 0 : index
    %10 = vector.load %arg7[%c0_6, %c0_7] : memref<16x128xbf16, #tpu.memory_space<vmem>>, vector<16x128xbf16>
    tpu.vector_store %arg7[%c0_6, %c0_7], %9 {strides = array<i32>} : memref<16x128xbf16, #tpu.memory_space<vmem>>, vector<16x128xbf16>,
    %11 = arith.truncf %8 : vector<16x128xf32> to vector<16x128xbf16>
    %c0_8 = arith.constant 0 : index
    %c0_9 = arith.constant 0 : index
    %12 = vector.load %arg4[%c0_8, %c0_9] : memref<128x10xbf16, #tpu.memory_space<vmem>>, vector<128x10xbf16>
    %cst_10 = arith.constant dense<0.000000e+00> : vector<16x10xf32>
    %13 = tpu.matmul %11, %12, %cst_10 {dimension_numbers = #tpu.dot_dimension_numbers<[1], [0], [0], [1], [0, 0, 1, 1], [], []>} : vector<16x128xbf16>, vector<128x10xbf16>, vector<16x10xf32> -> vector<16x10xf32>
    %c0_11 = arith.constant 0 : index
    %c0_12 = arith.constant 0 : index
    %14 = vector.load %arg5[%c0_11, %c0_12] : memref<1x10xf32, #tpu.memory_space<vmem>>, vector<1x10xf32>
    %15 = vector.broadcast %14 : vector<1x10xf32> to vector<16x10xf32>
    %16 = arith.addf %13, %15 : vector<16x10xf32>
    %c0_13 = arith.constant 0 : index
    %c0_14 = arith.constant 0 : index
    %17 = vector.load %arg6[%c0_13, %c0_14] : memref<16x10xf32, #tpu.memory_space<vmem>>, vector<16x10xf32>
    tpu.vector_store %arg6[%c0_13, %c0_14], %16 {strides = array<i32>} : memref<16x10xf32, #tpu.memory_space<vmem>>, vector<16x10xf32>,
    return
  }
  func.func @transform_0(%arg0: i32) -> (i32, i32) {
    %c0_i32 = arith.constant 0 : i32
    %c0_i32_0 = arith.constant 0 : i32
    return %arg0, %c0_i32 : i32, i32
  }
  func.func @transform_1(%arg0: i32) -> (i32, i32) {
    %c0_i32 = arith.constant 0 : i32
    %c0_i32_0 = arith.constant 0 : i32
    %c0_i32_1 = arith.constant 0 : i32
    return %c0_i32, %c0_i32_0 : i32, i32
  }
  func.func @transform_2(%arg0: i32) -> (i32, i32) {
    %c0_i32 = arith.constant 0 : i32
    %c0_i32_0 = arith.constant 0 : i32
    %c0_i32_1 = arith.constant 0 : i32
    return %c0_i32, %c0_i32_0 : i32, i32
  }
  func.func @transform_3(%arg0: i32) -> (i32, i32) {
    %c0_i32 = arith.constant 0 : i32
    %c0_i32_0 = arith.constant 0 : i32
    %c0_i32_1 = arith.constant 0 : i32
    return %c0_i32, %c0_i32_0 : i32, i32
  }
  func.func @transform_4(%arg0: i32) -> (i32, i32) {
    %c0_i32 = arith.constant 0 : i32
    %c0_i32_0 = arith.constant 0 : i32
    %c0_i32_1 = arith.constant 0 : i32
    return %c0_i32, %c0_i32_0 : i32, i32
  }
  func.func @transform_5(%arg0: i32) -> (i32, i32) {
    %c0_i32 = arith.constant 0 : i32
    %c0_i32_0 = arith.constant 0 : i32
    return %arg0, %c0_i32 : i32, i32
  }
  func.func @transform_6(%arg0: i32) -> (i32, i32) {
    %c0_i32 = arith.constant 0 : i32
    %c0_i32_0 = arith.constant 0 : i32
    return %arg0, %c0_i32 : i32, i32
  }
}

</mosaic_0001>

<llo_original>
// kernel: tpu_custom_call.1
$region0: #{tpu_custom_call.1}
  #allocation0 [shape = 'u32[]', space=smem, size = 0x4, offset = 0x4, fixed_abs, tag = 'smem constant byte address 0x4 - core index']
  #allocation1 [shape = 'u32[72,128]{1,0:T(1,128)}', space=vmem, size = 0x9000, scoped, tag = 'internal scratch']
  %s0 = inlined_call_operand.hbm [shape: f32[16,1024], index: 0, kind: input, shape index: {}]
  %s1 = inlined_call_operand.hbm [shape: bf16[1024,128], index: 1, kind: input, shape index: {}]
  %s2 = inlined_call_operand.vmem [shape: f32[1,128], index: 2, kind: input, shape index: {}]
  %s3 = inlined_call_operand.vmem [shape: bf16[128,10], index: 3, kind: input, shape index: {}]
  %s4 = inlined_call_operand.vmem [shape: f32[1,10], index: 4, kind: input, shape index: {}]
  %s5 = inlined_call_operand.hbm [shape: f32[16,10], index: 5, kind: output, shape index: {0}]
  %s6 = inlined_call_operand.hbm [shape: bf16[16,128], index: 6, kind: output, shape index: {1}]
  %7 = xla_tuple %s5, %s6
  %s8 = sld [smem:[#allocation0]]
  $region46: #{tpu_custom_call.1} parent=0
    _
  %s10 = ssub.s32 1, %s8
  %s11 = scalar_select 0, %s10, %s8
  $region1: #{tpu_custom_call.1} parent=0
    #allocation2 [shape = 'u8[65536]{0}', space=vmem, size = 0x10000, scoped, tag = 'input window, operand 0, single buffered']
    #allocation3 [shape = 's32[1]{0}', space=sflag, size = 0x4, scoped, tag = 'scoped memory for tpu_custom_call.1']
    #allocation4 [shape = 's32[1]{0}', space=sflag, size = 0x4, scoped, tag = 'scoped memory for tpu_custom_call.1']
    #allocation5 [shape = 'u8[262144]{0}', space=vmem, size = 0x40000, scoped, tag = 'input window, operand 1, single buffered']
    #allocation6 [shape = 's32[1]{0}', space=sflag, size = 0x4, scoped, tag = 'scoped memory for tpu_custom_call.1']
    #allocation7 [shape = 'u8[8192]{0}', space=vmem, size = 0x2000, scoped, tag = 'output window, operand 0, single buffered']
    #allocation8 [shape = 'u8[4096]{0}', space=vmem, size = 0x1000, scoped, tag = 'output window, operand 1, single buffered']
    #allocation9 [shape = 's32[1]{0}', space=sflag, size = 0x4, scoped, tag = 'scoped memory for tpu_custom_call.1']
    %12 = vsyncpa [#allocation3], 0
    %13 = vsyncpa [#allocation6], 0
    %14 = vsyncpa [#allocation4], 0
    %15 = vsyncpa [#allocation9], 0
    // Predicated region
    $region2: #{tpu_custom_call.1} parent=1 // pred_check
      _
    $region3: #{tpu_custom_call.1} parent=1 // pred_check_branch
      %17 = sbr.rel (0) target = $region5
    $region4: #{tpu_custom_call.1} parent=1 // pred_region
      %19 = vsyncadd [#allocation3], 0
      %s20 = sshll.u32 %s0, 4
      %s21 = int_to_ptr.hbm [resolvable:$true] %s20
      %s22 = sshll.u32 [#allocation2], 4
      %s23 = int_to_ptr.vmem [resolvable:$true] %s22
      %28 = dma.hbm_to_vmem [thread:$0]  %s21, 2048, %s23, [#allocation3], 1024, 1024, 64
    $region5: #{tpu_custom_call.1} parent=1 // pred_fallthru
      _
    // Predicated region
    $region6: #{tpu_custom_call.1} parent=1 // pred_check
      _
    $region7: #{tpu_custom_call.1} parent=1 // pred_check_branch
      %30 = sbr.rel (0) target = $region9
    $region8: #{tpu_custom_call.1} parent=1 // pred_region
      %32 = vsyncadd [#allocation6], 0
      %s33 = sshll.u32 %s1, 4
      %s34 = int_to_ptr.hbm [resolvable:$true] %s33
      %s35 = sshll.u32 [#allocation5], 4
      %s36 = int_to_ptr.vmem [resolvable:$true] %s35
      %41 = dma.hbm_to_vmem [thread:$0]  %s34, 8192, %s36, [#allocation6], 64, 64, 4
    $region9: #{tpu_custom_call.1} parent=1 // pred_fallthru
      _
    // Predicated region
    $region10: #{tpu_custom_call.1} parent=1 // pred_check
      _
    $region11: #{tpu_custom_call.1} parent=1 // pred_check_branch
      %43 = sbr.rel (0) target = $region13
    $region12: #{tpu_custom_call.1} parent=1 // pred_region
      _
    $region13: #{tpu_custom_call.1} parent=1 // pred_fallthru
      _
    // Predicated region
    $region14: #{tpu_custom_call.1} parent=1 // pred_check
      _
    $region15: #{tpu_custom_call.1} parent=1 // pred_check_branch
      %45 = sbr.rel (0) target = $region17
    $region16: #{tpu_custom_call.1} parent=1 // pred_region
      _
    $region17: #{tpu_custom_call.1} parent=1 // pred_fallthru
      _
    // Predicated region
    $region18: #{tpu_custom_call.1} parent=1 // pred_check
      _
    $region19: #{tpu_custom_call.1} parent=1 // pred_check_branch
      %47 = sbr.rel (0) target = $region21
    $region20: #{tpu_custom_call.1} parent=1 // pred_region
      _
    $region21: #{tpu_custom_call.1} parent=1 // pred_fallthru
      _
    // Predicated region
    $region22: #{tpu_custom_call.1} parent=1 // pred_check
      _
    $region23: #{tpu_custom_call.1} parent=1 // pred_check_branch
      %49 = sbr.rel (0) target = $region25
    $region24: #{tpu_custom_call.1} parent=1 // pred_region
      %51 = dma.done [#allocation3], 2048
    $region25: #{tpu_custom_call.1} parent=1 // pred_fallthru
      _
    // Predicated region
    $region26: #{tpu_custom_call.1} parent=1 // pred_check
      _
    $region27: #{tpu_custom_call.1} parent=1 // pred_check_branch
      %53 = sbr.rel (0) target = $region29
    $region28: #{tpu_custom_call.1} parent=1 // pred_region
      %55 = dma.done [#allocation6], 8192
    $region29: #{tpu_custom_call.1} parent=1 // pred_fallthru
      _
    %v56 = vld [vmem:[#allocation2] sm:$0xff]
    %v57 = vld [vmem:[#allocation2 + $0x8] sm:$0xff]
    %v58 = vld [vmem:[#allocation2 + $0x10] sm:$0xff]
    %v59 = vld [vmem:[#allocation2 + $0x18] sm:$0xff]
    %v60 = vld [vmem:[#allocation2 + $0x20] sm:$0xff]
    %v61 = vld [vmem:[#allocation2 + $0x28] sm:$0xff]
    %v62 = vld [vmem:[#allocation2 + $0x30] sm:$0xff]
    %v63 = vld [vmem:[#allocation2 + $0x38] sm:$0xff]
    %v64 = vld [vmem:[#allocation2 + $0x40] sm:$0xff]
    %v65 = vld [vmem:[#allocation2 + $0x48] sm:$0xff]
    %v66 = vld [vmem:[#allocation2 + $0x50] sm:$0xff]
    %v67 = vld [vmem:[#allocation2 + $0x58] sm:$0xff]
    %v68 = vld [vmem:[#allocation2 + $0x60] sm:$0xff]
    %v69 = vld [vmem:[#allocation2 + $0x68] sm:$0xff]
    %v70 = vld [vmem:[#allocation2 + $0x70] sm:$0xff]
    %v71 = vld [vmem:[#allocation2 + $0x78] sm:$0xff]
    %v72 = vpack.c.bf16 %v64, %v56
    %v73 = vpack.c.bf16 %v65, %v57
    %v74 = vpack.c.bf16 %v66, %v58
    %v75 = vpack.c.bf16 %v67, %v59
    %v76 = vpack.c.bf16 %v68, %v60
    %v77 = vpack.c.bf16 %v69, %v61
    %v78 = vpack.c.bf16 %v70, %v62
    %v79 = vpack.c.bf16 %v71, %v63
    %v80 = vld [vmem:[#allocation5] sm:$0xf]
    %v81 = vld [vmem:[#allocation5 + $0x4] sm:$0xf]
    %v82 = vld [vmem:[#allocation5 + $0x8] sm:$0xf]
    %v83 = vld [vmem:[#allocation5 + $0xc] sm:$0xf]
    %v84 = vld [vmem:[#allocation5 + $0x10] sm:$0xf]
    %v85 = vld [vmem:[#allocation5 + $0x14] sm:$0xf]
    %v86 = vld [vmem:[#allocation5 + $0x18] sm:$0xf]
    %v87 = vld [vmem:[#allocation5 + $0x1c] sm:$0xf]
    %v88 = vld [vmem:[#allocation5 + $0x20] sm:$0xf]
    %v89 = vld [vmem:[#allocation5 + $0x24] sm:$0xf]
    %v90 = vld [vmem:[#allocation5 + $0x28] sm:$0xf]
    %v91 = vld [vmem:[#allocation5 + $0x2c] sm:$0xf]
    %v92 = vld [vmem:[#allocation5 + $0x30] sm:$0xf]
    %v93 = vld [vmem:[#allocation5 + $0x34] sm:$0xf]
    %v94 = vld [vmem:[#allocation5 + $0x38] sm:$0xf]
    %v95 = vld [vmem:[#allocation5 + $0x3c] sm:$0xf]
    %v96 = vld [vmem:[#allocation5 + $0x40] sm:$0xf]
    %v97 = vld [vmem:[#allocation5 + $0x44] sm:$0xf]
    %v98 = vld [vmem:[#allocation5 + $0x48] sm:$0xf]
    %v99 = vld [vmem:[#allocation5 + $0x4c] sm:$0xf]
    %v100 = vld [vmem:[#allocation5 + $0x50] sm:$0xf]
    %v101 = vld [vmem:[#allocation5 + $0x54] sm:$0xf]
    %v102 = vld [vmem:[#allocation5 + $0x58] sm:$0xf]
    %v103 = vld [vmem:[#allocation5 + $0x5c] sm:$0xf]
    %v104 = vld [vmem:[#allocation5 + $0x60] sm:$0xf]
    %v105 = vld [vmem:[#allocation5 + $0x64] sm:$0xf]
    %v106 = vld [vmem:[#allocation5 + $0x68] sm:$0xf]
    %v107 = vld [vmem:[#allocation5 + $0x6c] sm:$0xf]
    %v108 = vld [vmem:[#allocation5 + $0x70] sm:$0xf]
    %v109 = vld [vmem:[#allocation5 + $0x74] sm:$0xf]
    %v110 = vld [vmem:[#allocation5 + $0x78] sm:$0xf]
    %v111 = vld [vmem:[#allocation5 + $0x7c] sm:$0xf]
    %v112 = vld [vmem:[#allocation5 + $0x80] sm:$0xf]
    %v113 = vld [vmem:[#allocation5 + $0x84] sm:$0xf]
    %v114 = vld [vmem:[#allocation5 + $0x88] sm:$0xf]
    %v115 = vld [vmem:[#allocation5 + $0x8c] sm:$0xf]
    %v116 = vld [vmem:[#allocation5 + $0x90] sm:$0xf]
    %v117 = vld [vmem:[#allocation5 + $0x94] sm:$0xf]
    %v118 = vld [vmem:[#allocation5 + $0x98] sm:$0xf]
    %v119 = vld [vmem:[#allocation5 + $0x9c] sm:$0xf]
    %v120 = vld [vmem:[#allocation5 + $0xa0] sm:$0xf]
    %v121 = vld [vmem:[#allocation5 + $0xa4] sm:$0xf]
    %v122 = vld [vmem:[#allocation5 + $0xa8] sm:$0xf]
    %v123 = vld [vmem:[#allocation5 + $0xac] sm:$0xf]
    %v124 = vld [vmem:[#allocation5 + $0xb0] sm:$0xf]
    %v125 = vld [vmem:[#allocation5 + $0xb4] sm:$0xf]
    %v126 = vld [vmem:[#allocation5 + $0xb8] sm:$0xf]
    %v127 = vld [vmem:[#allocation5 + $0xbc] sm:$0xf]
    %v128 = vld [vmem:[#allocation5 + $0xc0] sm:$0xf]
    %v129 = vld [vmem:[#allocation5 + $0xc4] sm:$0xf]
    %v130 = vld [vmem:[#allocation5 + $0xc8] sm:$0xf]
    %v131 = vld [vmem:[#allocation5 + $0xcc] sm:$0xf]
    %v132 = vld [vmem:[#allocation5 + $0xd0] sm:$0xf]
    %v133 = vld [vmem:[#allocation5 + $0xd4] sm:$0xf]
    %v134 = vld [vmem:[#allocation5 + $0xd8] sm:$0xf]
    %v135 = vld [vmem:[#allocation5 + $0xdc] sm:$0xf]
    %v136 = vld [vmem:[#allocation5 + $0xe0] sm:$0xf]
    %v137 = vld [vmem:[#allocation5 + $0xe4] sm:$0xf]
    %v138 = vld [vmem:[#allocation5 + $0xe8] sm:$0xf]
    %v139 = vld [vmem:[#allocation5 + $0xec] sm:$0xf]
    %v140 = vld [vmem:[#allocation5 + $0xf0] sm:$0xf]
    %v141 = vld [vmem:[#allocation5 + $0xf4] sm:$0xf]
    %v142 = vld [vmem:[#allocation5 + $0xf8] sm:$0xf]
    %v143 = vld [vmem:[#allocation5 + $0xfc] sm:$0xf]
    %v144 = vld [vmem:[#allocation5 + $0x100] sm:$0xf]
    %v145 = vld [vmem:[#allocation5 + $0x104] sm:$0xf]
    %v146 = vld [vmem:[#allocation5 + $0x108] sm:$0xf]
    %v147 = vld [vmem:[#allocation5 + $0x10c] sm:$0xf]
    %v148 = vld [vmem:[#allocation5 + $0x110] sm:$0xf]
    %v149 = vld [vmem:[#allocation5 + $0x114] sm:$0xf]
    %v150 = vld [vmem:[#allocation5 + $0x118] sm:$0xf]
    %v151 = vld [vmem:[#allocation5 + $0x11c] sm:$0xf]
    %v152 = vld [vmem:[#allocation5 + $0x120] sm:$0xf]
    %v153 = vld [vmem:[#allocation5 + $0x124] sm:$0xf]
    %v154 = vld [vmem:[#allocation5 + $0x128] sm:$0xf]
    %v155 = vld [vmem:[#allocation5 + $0x12c] sm:$0xf]
    %v156 = vld [vmem:[#allocation5 + $0x130] sm:$0xf]
    %v157 = vld [vmem:[#allocation5 + $0x134] sm:$0xf]
    %v158 = vld [vmem:[#allocation5 + $0x138] sm:$0xf]
    %v159 = vld [vmem:[#allocation5 + $0x13c] sm:$0xf]
    %v160 = vld [vmem:[#allocation5 + $0x140] sm:$0xf]
    %v161 = vld [vmem:[#allocation5 + $0x144] sm:$0xf]
    %v162 = vld [vmem:[#allocation5 + $0x148] sm:$0xf]
    %v163 = vld [vmem:[#allocation5 + $0x14c] sm:$0xf]
    %v164 = vld [vmem:[#allocation5 + $0x150] sm:$0xf]
    %v165 = vld [vmem:[#allocation5 + $0x154] sm:$0xf]
    %v166 = vld [vmem:[#allocation5 + $0x158] sm:$0xf]
    %v167 = vld [vmem:[#allocation5 + $0x15c] sm:$0xf]
    %v168 = vld [vmem:[#allocation5 + $0x160] sm:$0xf]
    %v169 = vld [vmem:[#allocation5 + $0x164] sm:$0xf]
    %v170 = vld [vmem:[#allocation5 + $0x168] sm:$0xf]
    %v171 = vld [vmem:[#allocation5 + $0x16c] sm:$0xf]
    %v172 = vld [vmem:[#allocation5 + $0x170] sm:$0xf]
    %v173 = vld [vmem:[#allocation5 + $0x174] sm:$0xf]
    %v174 = vld [vmem:[#allocation5 + $0x178] sm:$0xf]
    %v175 = vld [vmem:[#allocation5 + $0x17c] sm:$0xf]
    %v176 = vld [vmem:[#allocation5 + $0x180] sm:$0xf]
    %v177 = vld [vmem:[#allocation5 + $0x184] sm:$0xf]
    %v178 = vld [vmem:[#allocation5 + $0x188] sm:$0xf]
    %v179 = vld [vmem:[#allocation5 + $0x18c] sm:$0xf]
    %v180 = vld [vmem:[#allocation5 + $0x190] sm:$0xf]
    %v181 = vld [vmem:[#allocation5 + $0x194] sm:$0xf]
    %v182 = vld [vmem:[#allocation5 + $0x198] sm:$0xf]
    %v183 = vld [vmem:[#allocation5 + $0x19c] sm:$0xf]
    %v184 = vld [vmem:[#allocation5 + $0x1a0] sm:$0xf]
    %v185 = vld [vmem:[#allocation5 + $0x1a4] sm:$0xf]
    %v186 = vld [vmem:[#allocation5 + $0x1a8] sm:$0xf]
    %v187 = vld [vmem:[#allocation5 + $0x1ac] sm:$0xf]
    %v188 = vld [vmem:[#allocation5 + $0x1b0] sm:$0xf]
    %v189 = vld [vmem:[#allocation5 + $0x1b4] sm:$0xf]
    %v190 = vld [vmem:[#allocation5 + $0x1b8] sm:$0xf]
    %v191 = vld [vmem:[#allocation5 + $0x1bc] sm:$0xf]
    %v192 = vld [vmem:[#allocation5 + $0x1c0] sm:$0xf]
    %v193 = vld [vmem:[#allocation5 + $0x1c4] sm:$0xf]
    %v194 = vld [vmem:[#allocation5 + $0x1c8] sm:$0xf]
    %v195 = vld [vmem:[#allocation5 + $0x1cc] sm:$0xf]
    %v196 = vld [vmem:[#allocation5 + $0x1d0] sm:$0xf]
    %v197 = vld [vmem:[#allocation5 + $0x1d4] sm:$0xf]
    %v198 = vld [vmem:[#allocation5 + $0x1d8] sm:$0xf]
    %v199 = vld [vmem:[#allocation5 + $0x1dc] sm:$0xf]
    %v200 = vld [vmem:[#allocation5 + $0x1e0] sm:$0xf]
    %v201 = vld [vmem:[#allocation5 + $0x1e4] sm:$0xf]
    %v202 = vld [vmem:[#allocation5 + $0x1e8] sm:$0xf]
    %v203 = vld [vmem:[#allocation5 + $0x1ec] sm:$0xf]
    %v204 = vld [vmem:[#allocation5 + $0x1f0] sm:$0xf]
    %v205 = vld [vmem:[#allocation5 + $0x1f4] sm:$0xf]
    %v206 = vld [vmem:[#allocation5 + $0x1f8] sm:$0xf]
    %v207 = vld [vmem:[#allocation5 + $0x1fc] sm:$0xf]
    %v208 = vld [vmem:[%s2] sm:$0x1]
    %v210 = vperm.slane %v208, 0
    %v340 = vunpack.c.l.b16 %v80
    %v341 = vunpack.c.l.b16 %v81
    %v342 = vunpack.c.l.b16 %v82
    %v343 = vunpack.c.l.b16 %v83
    %v344 = vunpack.c.l.b16 %v84
    %v345 = vunpack.c.l.b16 %v85
    %v346 = vunpack.c.l.b16 %v86
    %v347 = vunpack.c.l.b16 %v87
    %v348 = vunpack.c.l.b16 %v88
    %v349 = vunpack.c.l.b16 %v89
    %v350 = vunpack.c.l.b16 %v90
    %v351 = vunpack.c.l.b16 %v91
    %v352 = vunpack.c.l.b16 %v92
    %v353 = vunpack.c.l.b16 %v93
    %v354 = vunpack.c.l.b16 %v94
    %v355 = vunpack.c.l.b16 %v95
    %v356 = vunpack.c.l.b16 %v96
    %v357 = vunpack.c.l.b16 %v97
    %v358 = vunpack.c.l.b16 %v98
    %v359 = vunpack.c.l.b16 %v99
    %v360 = vunpack.c.l.b16 %v100
    %v361 = vunpack.c.l.b16 %v101
    %v362 = vunpack.c.l.b16 %v102
    %v363 = vunpack.c.l.b16 %v103
    %v364 = vunpack.c.l.b16 %v104
    %v365 = vunpack.c.l.b16 %v105
    %v366 = vunpack.c.l.b16 %v106
    %v367 = vunpack.c.l.b16 %v107
    %v368 = vunpack.c.l.b16 %v108
    %v369 = vunpack.c.l.b16 %v109
    %v370 = vunpack.c.l.b16 %v110
    %v371 = vunpack.c.l.b16 %v111
    %v372 = vunpack.c.l.b16 %v112
    %v373 = vunpack.c.l.b16 %v113
    %v374 = vunpack.c.l.b16 %v114
    %v375 = vunpack.c.l.b16 %v115
    %v376 = vunpack.c.l.b16 %v116
    %v377 = vunpack.c.l.b16 %v117
    %v378 = vunpack.c.l.b16 %v118
    %v379 = vunpack.c.l.b16 %v119
    %v380 = vunpack.c.l.b16 %v120
    %v381 = vunpack.c.l.b16 %v121
    %v382 = vunpack.c.l.b16 %v122
    %v383 = vunpack.c.l.b16 %v123
    %v384 = vunpack.c.l.b16 %v124
    %v385 = vunpack.c.l.b16 %v125
    %v386 = vunpack.c.l.b16 %v126
    %v387 = vunpack.c.l.b16 %v127
    %v388 = vunpack.c.l.b16 %v128
    %v389 = vunpack.c.l.b16 %v129
    %v390 = vunpack.c.l.b16 %v130
    %v391 = vunpack.c.l.b16 %v131
    %v392 = vunpack.c.l.b16 %v132
    %v393 = vunpack.c.l.b16 %v133
    %v394 = vunpack.c.l.b16 %v134
    %v395 = vunpack.c.l.b16 %v135
    %v396 = vunpack.c.l.b16 %v136
    %v397 = vunpack.c.l.b16 %v137
    %v398 = vunpack.c.l.b16 %v138
    %v399 = vunpack.c.l.b16 %v139
    %v400 = vunpack.c.l.b16 %v140
    %v401 = vunpack.c.l.b16 %v141
    %v402 = vunpack.c.l.b16 %v142
    %v403 = vunpack.c.l.b16 %v143
    %v404 = vunpack.c.l.b16 %v144
    %v405 = vunpack.c.l.b16 %v145
    %v406 = vunpack.c.l.b16 %v146
    %v407 = vunpack.c.l.b16 %v147
    %v408 = vunpack.c.l.b16 %v148
    %v409 = vunpack.c.l.b16 %v149
    %v410 = vunpack.c.l.b16 %v150
    %v411 = vunpack.c.l.b16 %v151
    %v412 = vunpack.c.l.b16 %v152
    %v413 = vunpack.c.l.b16 %v153
    %v414 = vunpack.c.l.b16 %v154
    %v415 = vunpack.c.l.b16 %v155
    %v416 = vunpack.c.l.b16 %v156
    %v417 = vunpack.c.l.b16 %v157
    %v418 = vunpack.c.l.b16 %v158
    %v419 = vunpack.c.l.b16 %v159
    %v420 = vunpack.c.l.b16 %v160
    %v421 = vunpack.c.l.b16 %v161
    %v422 = vunpack.c.l.b16 %v162
    %v423 = vunpack.c.l.b16 %v163
    %v424 = vunpack.c.l.b16 %v164
    %v425 = vunpack.c.l.b16 %v165
    %v426 = vunpack.c.l.b16 %v166
    %v427 = vunpack.c.l.b16 %v167
    %v428 = vunpack.c.l.b16 %v168
    %v429 = vunpack.c.l.b16 %v169
    %v430 = vunpack.c.l.b16 %v170
    %v431 = vunpack.c.l.b16 %v171
    %v432 = vunpack.c.l.b16 %v172
    %v433 = vunpack.c.l.b16 %v173
    %v434 = vunpack.c.l.b16 %v174
    %v435 = vunpack.c.l.b16 %v175
    %v436 = vunpack.c.l.b16 %v176
    %v437 = vunpack.c.l.b16 %v177
    %v438 = vunpack.c.l.b16 %v178
    %v439 = vunpack.c.l.b16 %v179
    %v440 = vunpack.c.l.b16 %v180
    %v441 = vunpack.c.l.b16 %v181
    %v442 = vunpack.c.l.b16 %v182
    %v443 = vunpack.c.l.b16 %v183
    %v444 = vunpack.c.l.b16 %v184
    %v445 = vunpack.c.l.b16 %v185
    %v446 = vunpack.c.l.b16 %v186
    %v447 = vunpack.c.l.b16 %v187
    %v448 = vunpack.c.l.b16 %v188
    %v449 = vunpack.c.l.b16 %v189
    %v450 = vunpack.c.l.b16 %v190
    %v451 = vunpack.c.l.b16 %v191
    %v452 = vunpack.c.l.b16 %v192
    %v453 = vunpack.c.l.b16 %v193
    %v454 = vunpack.c.l.b16 %v194
    %v455 = vunpack.c.l.b16 %v195
    %v456 = vunpack.c.l.b16 %v196
    %v457 = vunpack.c.l.b16 %v197
    %v458 = vunpack.c.l.b16 %v198
    %v459 = vunpack.c.l.b16 %v199
    %v460 = vunpack.c.l.b16 %v200
    %v461 = vunpack.c.l.b16 %v201
    %v462 = vunpack.c.l.b16 %v202
    %v463 = vunpack.c.l.b16 %v203
    %v464 = vunpack.c.l.b16 %v204
    %v465 = vunpack.c.l.b16 %v205
    %v466 = vunpack.c.l.b16 %v206
    %v467 = vunpack.c.l.b16 %v207
    %v468 = vpack.c.b16 %v341, %v340
    %v469 = vpack.c.b16 %v343, %v342
    %v470 = vpack.c.b16 %v345, %v344
    %v471 = vpack.c.b16 %v347, %v346
    %v472 = vpack.c.b16 %v349, %v348
    %v473 = vpack.c.b16 %v351, %v350
    %v474 = vpack.c.b16 %v353, %v352
    %v475 = vpack.c.b16 %v355, %v354
    %v476 = vpack.c.b16 %v357, %v356
    %v477 = vpack.c.b16 %v359, %v358
    %v478 = vpack.c.b16 %v361, %v360
    %v479 = vpack.c.b16 %v363, %v362
    %v480 = vpack.c.b16 %v365, %v364
    %v481 = vpack.c.b16 %v367, %v366
    %v482 = vpack.c.b16 %v369, %v368
    %v483 = vpack.c.b16 %v371, %v370
    %v484 = vpack.c.b16 %v373, %v372
    %v485 = vpack.c.b16 %v375, %v374
    %v486 = vpack.c.b16 %v377, %v376
    %v487 = vpack.c.b16 %v379, %v378
    %v488 = vpack.c.b16 %v381, %v380
    %v489 = vpack.c.b16 %v383, %v382
    %v490 = vpack.c.b16 %v385, %v384
    %v491 = vpack.c.b16 %v387, %v386
    %v492 = vpack.c.b16 %v389, %v388
    %v493 = vpack.c.b16 %v391, %v390
    %v494 = vpack.c.b16 %v393, %v392
    %v495 = vpack.c.b16 %v395, %v394
    %v496 = vpack.c.b16 %v397, %v396
    %v497 = vpack.c.b16 %v399, %v398
    %v498 = vpack.c.b16 %v401, %v400
    %v499 = vpack.c.b16 %v403, %v402
    %v500 = vpack.c.b16 %v405, %v404
    %v501 = vpack.c.b16 %v407, %v406
    %v502 = vpack.c.b16 %v409, %v408
    %v503 = vpack.c.b16 %v411, %v410
    %v504 = vpack.c.b16 %v413, %v412
    %v505 = vpack.c.b16 %v415, %v414
    %v506 = vpack.c.b16 %v417, %v416
    %v507 = vpack.c.b16 %v419, %v418
    %v508 = vpack.c.b16 %v421, %v420
    %v509 = vpack.c.b16 %v423, %v422
    %v510 = vpack.c.b16 %v425, %v424
    %v511 = vpack.c.b16 %v427, %v426
    %v512 = vpack.c.b16 %v429, %v428
    %v513 = vpack.c.b16 %v431, %v430
    %v514 = vpack.c.b16 %v433, %v432
    %v515 = vpack.c.b16 %v435, %v434
    %v516 = vpack.c.b16 %v437, %v436
    %v517 = vpack.c.b16 %v439, %v438
    %v518 = vpack.c.b16 %v441, %v440
    %v519 = vpack.c.b16 %v443, %v442
    %v520 = vpack.c.b16 %v445, %v444
    %v521 = vpack.c.b16 %v447, %v446
    %v522 = vpack.c.b16 %v449, %v448
    %v523 = vpack.c.b16 %v451, %v450
    %v524 = vpack.c.b16 %v453, %v452
    %v525 = vpack.c.b16 %v455, %v454
    %v526 = vpack.c.b16 %v457, %v456
    %v527 = vpack.c.b16 %v459, %v458
    %v528 = vpack.c.b16 %v461, %v460
    %v529 = vpack.c.b16 %v463, %v462
    %v530 = vpack.c.b16 %v465, %v464
    %v531 = vpack.c.b16 %v467, %v466
    %596 = vmatpush.bf16.msra.mxu0 %v475
    %597 = vmatpush.bf16.msra.mxu0 %v474
    %598 = vmatpush.bf16.msra.mxu0 %v473
    %599 = vmatpush.bf16.msra.mxu0 %v472
    %600 = vmatpush.bf16.msra.mxu0 %v471
    %601 = vmatpush.bf16.msra.mxu0 %v470
    %602 = vmatpush.bf16.msra.mxu0 %v469
    %603 = vmatpush.bf16.msra.mxu0 %v468
    %604 = vmatmul.bf16.gmra.mxu0 %v72
    %v605 = vpop.f32.mrf.mxu0
    %v606 = vadd.f32 %v210, %v605
    %v607 = vpop.f32.mrf.mxu0
    %v608 = vadd.f32 %v210, %v607
    %609 = vdwg.mxu0
    %610 = vmatpush.bf16.msra.mxu0 %v483
    %611 = vmatpush.bf16.msra.mxu0 %v482
    %612 = vmatpush.bf16.msra.mxu0 %v481
    %613 = vmatpush.bf16.msra.mxu0 %v480
    %614 = vmatpush.bf16.msra.mxu0 %v479
    %615 = vmatpush.bf16.msra.mxu0 %v478
    %616 = vmatpush.bf16.msra.mxu0 %v477
    %617 = vmatpush.bf16.msra.mxu0 %v476
    %618 = vmatmul.bf16.gmra.mxu0 %v73
    %v619 = vpop.f32.mrf.mxu0
    %v620 = vadd.f32 %v606, %v619
    %v621 = vpop.f32.mrf.mxu0
    %v622 = vadd.f32 %v608, %v621
    %623 = vdwg.mxu0
    %624 = vmatpush.bf16.msra.mxu0 %v491
    %625 = vmatpush.bf16.msra.mxu0 %v490
    %626 = vmatpush.bf16.msra.mxu0 %v489
    %627 = vmatpush.bf16.msra.mxu0 %v488
    %628 = vmatpush.bf16.msra.mxu0 %v487
    %629 = vmatpush.bf16.msra.mxu0 %v486
    %630 = vmatpush.bf16.msra.mxu0 %v485
    %631 = vmatpush.bf16.msra.mxu0 %v484
    %632 = vmatmul.bf16.gmra.mxu0 %v74
    %v633 = vpop.f32.mrf.mxu0
    %v634 = vadd.f32 %v620, %v633
    %v635 = vpop.f32.mrf.mxu0
    %v636 = vadd.f32 %v622, %v635
    %637 = vdwg.mxu0
    %638 = vmatpush.bf16.msra.mxu0 %v499
    %639 = vmatpush.bf16.msra.mxu0 %v498
    %640 = vmatpush.bf16.msra.mxu0 %v497
    %641 = vmatpush.bf16.msra.mxu0 %v496
    %642 = vmatpush.bf16.msra.mxu0 %v495
    %643 = vmatpush.bf16.msra.mxu0 %v494
    %644 = vmatpush.bf16.msra.mxu0 %v493
    %645 = vmatpush.bf16.msra.mxu0 %v492
    %646 = vmatmul.bf16.gmra.mxu0 %v75
    %v647 = vpop.f32.mrf.mxu0
    %v648 = vadd.f32 %v634, %v647
    %v649 = vpop.f32.mrf.mxu0
    %v650 = vadd.f32 %v636, %v649
    %651 = vdwg.mxu0
    %652 = vmatpush.bf16.msra.mxu0 %v507
    %653 = vmatpush.bf16.msra.mxu0 %v506
    %654 = vmatpush.bf16.msra.mxu0 %v505
    %655 = vmatpush.bf16.msra.mxu0 %v504
    %656 = vmatpush.bf16.msra.mxu0 %v503
    %657 = vmatpush.bf16.msra.mxu0 %v502
    %658 = vmatpush.bf16.msra.mxu0 %v501
    %659 = vmatpush.bf16.msra.mxu0 %v500
    %660 = vmatmul.bf16.gmra.mxu0 %v76
    %v661 = vpop.f32.mrf.mxu0
    %v662 = vadd.f32 %v648, %v661
    %v663 = vpop.f32.mrf.mxu0
    %v664 = vadd.f32 %v650, %v663
    %665 = vdwg.mxu0
    %666 = vmatpush.bf16.msra.mxu0 %v515
    %667 = vmatpush.bf16.msra.mxu0 %v514
    %668 = vmatpush.bf16.msra.mxu0 %v513
    %669 = vmatpush.bf16.msra.mxu0 %v512
    %670 = vmatpush.bf16.msra.mxu0 %v511
    %671 = vmatpush.bf16.msra.mxu0 %v510
    %672 = vmatpush.bf16.msra.mxu0 %v509
    %673 = vmatpush.bf16.msra.mxu0 %v508
    %674 = vmatmul.bf16.gmra.mxu0 %v77
    %v675 = vpop.f32.mrf.mxu0
    %v676 = vadd.f32 %v662, %v675
    %v677 = vpop.f32.mrf.mxu0
    %v678 = vadd.f32 %v664, %v677
    %679 = vdwg.mxu0
    %680 = vmatpush.bf16.msra.mxu0 %v523
    %681 = vmatpush.bf16.msra.mxu0 %v522
    %682 = vmatpush.bf16.msra.mxu0 %v521
    %683 = vmatpush.bf16.msra.mxu0 %v520
    %684 = vmatpush.bf16.msra.mxu0 %v519
    %685 = vmatpush.bf16.msra.mxu0 %v518
    %686 = vmatpush.bf16.msra.mxu0 %v517
    %687 = vmatpush.bf16.msra.mxu0 %v516
    %688 = vmatmul.bf16.gmra.mxu0 %v78
    %v689 = vpop.f32.mrf.mxu0
    %v690 = vadd.f32 %v676, %v689
    %v691 = vpop.f32.mrf.mxu0
    %v692 = vadd.f32 %v678, %v691
    %693 = vdwg.mxu0
    %694 = vmatpush.bf16.msra.mxu0 %v531
    %695 = vmatpush.bf16.msra.mxu0 %v530
    %696 = vmatpush.bf16.msra.mxu0 %v529
    %697 = vmatpush.bf16.msra.mxu0 %v528
    %698 = vmatpush.bf16.msra.mxu0 %v527
    %699 = vmatpush.bf16.msra.mxu0 %v526
    %700 = vmatpush.bf16.msra.mxu0 %v525
    %701 = vmatpush.bf16.msra.mxu0 %v524
    %702 = vmatmul.bf16.gmra.mxu0 %v79
    %v703 = vpop.f32.mrf.mxu0
    %v704 = vadd.f32 %v690, %v703
    %v705 = vpop.f32.mrf.mxu0
    %v706 = vadd.f32 %v692, %v705
    %707 = vdwg.mxu0
    %v708 = vmax.f32 %v704, 0.0
    %v709 = vmax.f32 %v706, 0.0
    %v710 = vpack.c.bf16 %v708, %v708
    %v711 = vpack.c.bf16 %v709, %v709
    %712 = vst [vmem:[#allocation8] sm:$0xf] %v710
    %713 = vst [vmem:[#allocation8 + $0x4] sm:$0xf] %v711
    %v714 = vld [vmem:[%s3] sm:$0xf]
    %v715 = vld [vmem:[%s3 + $0x4] sm:$0xf]
    %v716 = vld [vmem:[%s3 + $0x8] sm:$0xf]
    %v717 = vld [vmem:[%s3 + $0xc] sm:$0xf]
    %v718 = vld [vmem:[%s3 + $0x10] sm:$0xf]
    %v719 = vld [vmem:[%s3 + $0x14] sm:$0xf]
    %v720 = vld [vmem:[%s3 + $0x18] sm:$0xf]
    %v721 = vld [vmem:[%s3 + $0x1c] sm:$0xf]
    %v722 = vld [vmem:[%s3 + $0x20] sm:$0xf]
    %v723 = vld [vmem:[%s3 + $0x24] sm:$0xf]
    %v724 = vld [vmem:[%s3 + $0x28] sm:$0xf]
    %v725 = vld [vmem:[%s3 + $0x2c] sm:$0xf]
    %v726 = vld [vmem:[%s3 + $0x30] sm:$0xf]
    %v727 = vld [vmem:[%s3 + $0x34] sm:$0xf]
    %v728 = vld [vmem:[%s3 + $0x38] sm:$0xf]
    %v729 = vld [vmem:[%s3 + $0x3c] sm:$0xf]
    %v730 = vld [vmem:[%s4] sm:$0x1]
    %v732 = vperm.slane %v730, 0
    %v736 = vunpack.c.l.b16 %v710
    %v737 = vunpack.c.l.b16 %v711
    %v738 = vpack.c.b16 %v737, %v736
    %v756 = vunpack.c.l.b16 %v714
    %v757 = vunpack.c.l.b16 %v715
    %v758 = vunpack.c.l.b16 %v716
    %v759 = vunpack.c.l.b16 %v717
    %v760 = vunpack.c.l.b16 %v718
    %v761 = vunpack.c.l.b16 %v719
    %v762 = vunpack.c.l.b16 %v720
    %v763 = vunpack.c.l.b16 %v721
    %v764 = vunpack.c.l.b16 %v722
    %v765 = vunpack.c.l.b16 %v723
    %v766 = vunpack.c.l.b16 %v724
    %v767 = vunpack.c.l.b16 %v725
    %v768 = vunpack.c.l.b16 %v726
    %v769 = vunpack.c.l.b16 %v727
    %v770 = vunpack.c.l.b16 %v728
    %v771 = vunpack.c.l.b16 %v729
    %v772 = vpack.c.b16 %v757, %v756
    %v773 = vpack.c.b16 %v759, %v758
    %v774 = vpack.c.b16 %v761, %v760
    %v775 = vpack.c.b16 %v763, %v762
    %v776 = vpack.c.b16 %v765, %v764
    %v777 = vpack.c.b16 %v767, %v766
    %v778 = vpack.c.b16 %v769, %v768
    %v779 = vpack.c.b16 %v771, %v770
    %788 = vmatpush.bf16.msra.mxu0 %v779
    %789 = vmatpush.bf16.msra.mxu0 %v778
    %790 = vmatpush.bf16.msra.mxu0 %v777
    %791 = vmatpush.bf16.msra.mxu0 %v776
    %792 = vmatpush.bf16.msra.mxu0 %v775
    %793 = vmatpush.bf16.msra.mxu0 %v774
    %794 = vmatpush.bf16.msra.mxu0 %v773
    %795 = vmatpush.bf16.msra.mxu0 %v772
    %796 = vmatmul.bf16.gmra.mxu0 %v738
    %v797 = vpop.f32.mrf.mxu0
    %v798 = vadd.f32 %v732, %v797
    %v799 = vpop.f32.mrf.mxu0
    %v800 = vadd.f32 %v732, %v799
    %801 = vdwg.mxu0
    %vm802 = vcmask 80896
    %803 = vst.msk [vmem:[#allocation7] sm:$0xff] %vm802, %v798
    %804 = vst.msk [vmem:[#allocation7 + $0x8] sm:$0xff] %vm802, %v800
    // Predicated region
    $region30: #{tpu_custom_call.1} parent=1 // pred_check
      _
    $region31: #{tpu_custom_call.1} parent=1 // pred_check_branch
      %806 = sbr.rel (0) target = $region33
    $region32: #{tpu_custom_call.1} parent=1 // pred_region
      %808 = vsyncadd [#allocation4], 0
      %s809 = sshll.u32 [#allocation7], 4
      %s810 = int_to_ptr.vmem [resolvable:$true] %s809
      %s811 = sshll.u32 %s5, 4
      %s812 = int_to_ptr.hbm [resolvable:$true] %s811
      %817 = dma.vmem_to_hbm [thread:$0]  %s810, 256, %s812, [#allocation4], 128, 128, 8
    $region33: #{tpu_custom_call.1} parent=1 // pred_fallthru
      _
    // Predicated region
    $region34: #{tpu_custom_call.1} parent=1 // pred_check
      _
    $region35: #{tpu_custom_call.1} parent=1 // pred_check_branch
      %819 = sbr.rel (0) target = $region37
    $region36: #{tpu_custom_call.1} parent=1 // pred_region
      %821 = vsyncadd [#allocation9], 0
      %s822 = sshll.u32 [#allocation8], 4
      %s823 = int_to_ptr.vmem [resolvable:$true] %s822
      %s824 = sshll.u32 %s6, 4
      %s825 = int_to_ptr.hbm [resolvable:$true] %s824
      %830 = dma.vmem_to_hbm [thread:$0]  %s823, 128, %s825, [#allocation9], 64, 64, 4
    $region37: #{tpu_custom_call.1} parent=1 // pred_fallthru
      _
    // Predicated region
    $region38: #{tpu_custom_call.1} parent=1 // pred_check
      _
    $region39: #{tpu_custom_call.1} parent=1 // pred_check_branch
      %832 = sbr.rel (0) target = $region41
    $region40: #{tpu_custom_call.1} parent=1 // pred_region
      %834 = dma.done [#allocation4], 256
    $region41: #{tpu_custom_call.1} parent=1 // pred_fallthru
      _
    // Predicated region
    $region42: #{tpu_custom_call.1} parent=1 // pred_check
      _
    $region43: #{tpu_custom_call.1} parent=1 // pred_check_branch
      %836 = sbr.rel (0) target = $region45
    $region44: #{tpu_custom_call.1} parent=1 // pred_region
      %838 = dma.done [#allocation9], 128
    $region45: #{tpu_custom_call.1} parent=1 // pred_fallthru
      _
    %839 = vsyncpa [#allocation3], 1
    %840 = vsyncpa [#allocation6], 1
    %841 = vsyncpa [#allocation4], 1
    %842 = vsyncpa [#allocation9], 1

</llo_original>
